<compile_context>
chip_gen: v7x
topology: tpu7x:2x2x1
jax: 0.10.0
libtpu: 0.0.40
codegen_flags: <defaults>
</compile_context>

<pallas_src>
import jax
import jax.numpy as jnp
from jax.experimental import pallas as pl
from jax.experimental.pallas import tpu as pltpu

_LANES = 128
_BLOCK_BYTES = 2 * 1024 * 1024  # ~2 MiB per block (x2 arrays x2 bufs ~ 8 MiB VMEM)


def _double_sqrt_kernel(x_ref, o_ref):
    # y = sqrt(sqrt(x)); purely elementwise, HBM-bandwidth bound.
    o_ref[...] = jnp.sqrt(jnp.sqrt(x_ref[...]))


def _sublane_multiple(dtype) -> int:
    itemsize = jnp.dtype(dtype).itemsize
    return {4: 8, 2: 16, 1: 32}.get(itemsize, 8)


def simple_sqrt_model(x):
    """Pallas equivalent of SimpleSqrtModel.forward: sqrt(sqrt(x))."""
    orig_shape = x.shape

    # torch.sqrt promotes integer tensors to floating point.
    if not jnp.issubdtype(x.dtype, jnp.floating):
        x = x.astype(jnp.float32)
    dtype = x.dtype
    itemsize = jnp.dtype(dtype).itemsize

    total = int(x.size)
    if total == 0:
        return x.reshape(orig_shape)

    sub = _sublane_multiple(dtype)
    chunk = sub * _LANES  # one minimal (sublane, lane) tile, in elements

    x_flat = x.reshape(-1)

    # Pad the flat tail only when needed (awkward element counts).  Common
    # NCHW sizes are already chunk-aligned -> no pad / no extra HBM pass.
    pad = (-total) % chunk
    if pad:
        x_flat = jnp.pad(x_flat, (0, pad))
    padded = total + pad

    rows = padded // _LANES  # always a multiple of `sub`

    # Rows per block for ~2 MiB blocks; multiple of the sublane tile by
    # construction (4096 rows f32 / 8192 rows bf16 / 16384 rows int8).
    tr_target = max(sub, _BLOCK_BYTES // (_LANES * itemsize))
    tr = rows if rows <= tr_target else tr_target
    grid = (pl.cdiv(rows, tr),)  # partial edge block (if any) handled by Pallas

    x2d = x_flat.reshape(rows, _LANES)

    out2d = pl.pallas_call(
        _double_sqrt_kernel,
        out_shape=jax.ShapeDtypeStruct((rows, _LANES), dtype),
        grid_spec=pltpu.PrefetchScalarGridSpec(
            num_scalar_prefetch=0,
            grid=grid,
            in_specs=[pl.BlockSpec((tr, _LANES), lambda i: (i, 0))],
            out_specs=pl.BlockSpec((tr, _LANES), lambda i: (i, 0)),
        ),
        compiler_params=pltpu.CompilerParams(
            # Single parallel axis -> shards across both TensorCores on v7x.
            dimension_semantics=("parallel",),
        ),
    )(x2d)

    out_flat = out2d.reshape(-1)
    if pad:
        out_flat = out_flat[:total]
    return out_flat.reshape(orig_shape)


if __name__ == "__main__":
    key = jax.random.PRNGKey(0)

    # Primary test: small NCHW input, strictly positive (sqrt domain).
    x = jax.random.uniform(
        key, (2, 4, 16, 16), dtype=jnp.float32, minval=0.1, maxval=4.0
    )
    y = jax.block_until_ready(simple_sqrt_model(x))
    ref = jnp.sqrt(jnp.sqrt(x))
    assert y.shape == x.shape and y.dtype == x.dtype
    assert jnp.allclose(y, ref, rtol=1e-6, atol=1e-6)

    # Multi-block path (grid > 1, ~4 MiB f32).
    x2 = jax.random.uniform(
        jax.random.PRNGKey(1), (16, 64, 32, 32), dtype=jnp.float32,
        minval=0.1, maxval=4.0
    )
    y2 = jax.block_until_ready(simple_sqrt_model(x2))
    assert jnp.allclose(y2, jnp.sqrt(jnp.sqrt(x2)), rtol=1e-6, atol=1e-6)

    # Non-aligned element count -> exercises the (minimal) pad/slice path.
    x3 = jax.random.uniform(
        jax.random.PRNGKey(2), (3, 5, 7, 11), dtype=jnp.float32,
        minval=0.1, maxval=4.0
    )
    y3 = jax.block_until_ready(simple_sqrt_model(x3))
    assert y3.shape == x3.shape
    assert jnp.allclose(y3, jnp.sqrt(jnp.sqrt(x3)), rtol=1e-6, atol=1e-6)

    print("KERNEL_OK")
</pallas_src>

<mosaic_0001>
module attributes {stable_mosaic.version = 11 : i64} {
  func.func @_double_sqrt_kernel(%arg0: i32, %arg1: memref<16x128xf32, #tpu.memory_space<vmem>>, %arg2: memref<16x128xf32, #tpu.memory_space<vmem>>) attributes {dimension_semantics = [#tpu.dimension_semantics<parallel>], iteration_bounds = array<i64: 1>, scalar_prefetch = 0 : i64, scratch_operands = 0 : i64, tpu.core_type = #tpu.core_type<tc>, window_params = [{transform_indices = @transform_0, window_bounds = array<i64: 16, 128>}, {transform_indices = @transform_1, window_bounds = array<i64: 16, 128>}]} {
    %c0 = arith.constant 0 : index
    %c0_0 = arith.constant 0 : index
    %0 = vector.load %arg1[%c0, %c0_0] : memref<16x128xf32, #tpu.memory_space<vmem>>, vector<16x128xf32>
    %1 = math.sqrt %0 : vector<16x128xf32>
    %2 = math.sqrt %1 : vector<16x128xf32>
    %c0_1 = arith.constant 0 : index
    %c0_2 = arith.constant 0 : index
    %3 = vector.load %arg2[%c0_1, %c0_2] : memref<16x128xf32, #tpu.memory_space<vmem>>, vector<16x128xf32>
    tpu.vector_store %arg2[%c0_1, %c0_2], %2 {strides = array<i32>} : memref<16x128xf32, #tpu.memory_space<vmem>>, vector<16x128xf32>,
    return
  }
  func.func @transform_0(%arg0: i32) -> (i32, i32) {
    %c0_i32 = arith.constant 0 : i32
    %c0_i32_0 = arith.constant 0 : i32
    return %arg0, %c0_i32 : i32, i32
  }
  func.func @transform_1(%arg0: i32) -> (i32, i32) {
    %c0_i32 = arith.constant 0 : i32
    %c0_i32_0 = arith.constant 0 : i32
    return %arg0, %c0_i32 : i32, i32
  }
}

</mosaic_0001>

<llo_original>
// kernel: tpu_custom_call.1
$region0: #{tpu_custom_call.1}
  #allocation0 [shape = 'u32[]', space=smem, size = 0x4, offset = 0x4, fixed_abs, tag = 'smem constant byte address 0x4 - core index']
  #allocation1 [shape = 'u32[144,128]{1,0:T(1,128)}', space=vmem, size = 0x12000, scoped, tag = 'internal scratch']
  %s0 = inlined_call_operand.hbm [shape: f32[16,128], index: 0, kind: input, shape index: {}]
  %s1 = inlined_call_operand.hbm [shape: f32[16,128], index: 1, kind: output, shape index: {}]
  %s2 = sld [smem:[#allocation0]]
  $region18: #{tpu_custom_call.1} parent=0
    _
  %s4 = ssub.s32 1, %s2
  %s5 = scalar_select 0, %s4, %s2
  $region1: #{tpu_custom_call.1} parent=0
    #allocation2 [shape = 'u8[8192]{0}', space=vmem, size = 0x2000, scoped, tag = 'input window, operand 0, single buffered']
    #allocation3 [shape = 's32[1]{0}', space=sflag, size = 0x4, scoped, tag = 'scoped memory for tpu_custom_call.1']
    #allocation4 [shape = 's32[1]{0}', space=sflag, size = 0x4, scoped, tag = 'scoped memory for tpu_custom_call.1']
    #allocation5 [shape = 'u8[8192]{0}', space=vmem, size = 0x2000, scoped, tag = 'output window, operand 0, single buffered']
    %6 = vsyncpa [#allocation3], 0
    %7 = vsyncpa [#allocation4], 0
    // Predicated region
    $region2: #{tpu_custom_call.1} parent=1 // pred_check
      _
    $region3: #{tpu_custom_call.1} parent=1 // pred_check_branch
      %9 = sbr.rel (0) target = $region5
    $region4: #{tpu_custom_call.1} parent=1 // pred_region
      %s11 = ssub.s32 256, 256
      %12 = vsyncadd [#allocation3], %s11
      %s13 = sshll.u32 [#allocation2], 4
      %s14 = int_to_ptr.vmem [resolvable:$true] %s13
      %19 = dma.hbm_to_vmem [thread:$0]  %s0, 256, %s14, [#allocation3], 128, 128, 8
    $region5: #{tpu_custom_call.1} parent=1 // pred_fallthru
      _
    // Predicated region
    $region6: #{tpu_custom_call.1} parent=1 // pred_check
      _
    $region7: #{tpu_custom_call.1} parent=1 // pred_check_branch
      %21 = sbr.rel (0) target = $region9
    $region8: #{tpu_custom_call.1} parent=1 // pred_region
      %22 = dma.done [#allocation3], 256
    $region9: #{tpu_custom_call.1} parent=1 // pred_fallthru
      _
    %v23 = vld [vmem:[#allocation2] sm:$0xff]
    %v24 = vld [vmem:[#allocation2 + $0x8] sm:$0xff]
    %v25 = vrsqrt.pop %v23
    %v26 = vmul.f32 %v23, %v25
    %vm27 = vcmp.eq.f32.partialorder %v23, inf
    %v28 = vsel %vm27, %v23, %v26
    %vm29 = vcmp.eq.f32.partialorder %v23, 0.0
    %v30 = vand.u32 %v23, 2147483648
    %v31 = vsel %vm29, %v30, %v28
    %v32 = vrsqrt.pop %v24
    %v33 = vmul.f32 %v24, %v32
    %vm34 = vcmp.eq.f32.partialorder %v24, inf
    %v35 = vsel %vm34, %v24, %v33
    %vm36 = vcmp.eq.f32.partialorder %v24, 0.0
    %v37 = vand.u32 %v24, 2147483648
    %v38 = vsel %vm36, %v37, %v35
    %v39 = vrsqrt.pop %v31
    %v40 = vmul.f32 %v31, %v39
    %vm41 = vcmp.eq.f32.partialorder %v31, inf
    %v42 = vsel %vm41, %v31, %v40
    %vm43 = vcmp.eq.f32.partialorder %v31, 0.0
    %v44 = vand.u32 %v31, 2147483648
    %v45 = vsel %vm43, %v44, %v42
    %v46 = vrsqrt.pop %v38
    %v47 = vmul.f32 %v38, %v46
    %vm48 = vcmp.eq.f32.partialorder %v38, inf
    %v49 = vsel %vm48, %v38, %v47
    %vm50 = vcmp.eq.f32.partialorder %v38, 0.0
    %v51 = vand.u32 %v38, 2147483648
    %v52 = vsel %vm50, %v51, %v49
    %53 = vst [vmem:[#allocation5] sm:$0xff] %v45
    %54 = vst [vmem:[#allocation5 + $0x8] sm:$0xff] %v52
    // Predicated region
    $region10: #{tpu_custom_call.1} parent=1 // pred_check
      _
    $region11: #{tpu_custom_call.1} parent=1 // pred_check_branch
      %56 = sbr.rel (0) target = $region13
    $region12: #{tpu_custom_call.1} parent=1 // pred_region
      %s58 = ssub.s32 256, 256
      %59 = vsyncadd [#allocation4], %s58
      %s60 = sshll.u32 [#allocation5], 4
      %s61 = int_to_ptr.vmem [resolvable:$true] %s60
      %66 = dma.vmem_to_hbm [thread:$0]  %s61, 256, %s1, [#allocation4], 128, 128, 8
    $region13: #{tpu_custom_call.1} parent=1 // pred_fallthru
      _
    // Predicated region
    $region14: #{tpu_custom_call.1} parent=1 // pred_check
      _
    $region15: #{tpu_custom_call.1} parent=1 // pred_check_branch
      %68 = sbr.rel (0) target = $region17
    $region16: #{tpu_custom_call.1} parent=1 // pred_region
      %69 = dma.done [#allocation4], 256
    $region17: #{tpu_custom_call.1} parent=1 // pred_fallthru
      _
    %70 = vsyncpa [#allocation3], 1
    %71 = vsyncpa [#allocation4], 1

</llo_original>
